<compile_context>
chip_gen: v6e
topology: v6e:2x2x1
jax: 0.10.0
libtpu: 0.0.40
codegen_flags: <defaults>
</compile_context>

<pallas_src>
import jax
import jax.numpy as jnp
from jax.experimental import pallas as pl
from jax.experimental.pallas import tpu as pltpu

N_PAD = 128  # lane-dense padded output width (true output width is 2)


def clmn_head_kernel(origin_ref, revised_ref, text_ref,
                     w_code_ref, w_text_ref, b_ref, out_ref):
    # |origin - revised| -> (bt, 256); cast to bf16 so both dots are
    # single-pass bf16 MXU matmuls with f32 accumulation.
    code_dist = jnp.abs(origin_ref[...] - revised_ref[...]).astype(jnp.bfloat16)
    text = text_ref[...].astype(jnp.bfloat16)
    # Folded text path: (bt, 1024) @ (1024, 128)
    acc = jnp.dot(text, w_text_ref[...], preferred_element_type=jnp.float32)
    # Code path: (bt, 256) @ (256, 128)  -- replaces the concat + single fc dot
    acc = acc + jnp.dot(code_dist, w_code_ref[...],
                        preferred_element_type=jnp.float32)
    out_ref[...] = (acc + b_ref[...]).astype(out_ref.dtype)


def prepare_params(params):
    """One-time host-side parameter prep (transpose / split / fold / pad / cast)."""
    svd_w = params["svd_w"].astype(jnp.float32)   # (256, 1024)  PyTorch (out, in)
    svd_b = params["svd_b"].astype(jnp.float32)   # (256,)
    fc_w = params["fc_w"].astype(jnp.float32)     # (2, 512)
    fc_b = params["fc_b"].astype(jnp.float32)     # (2,)

    d_code = svd_w.shape[0]            # 256
    n_out = fc_w.shape[0]              # 2

    fc_wT = fc_w.T                     # (512, 2)
    fc_w_code = fc_wT[:d_code]         # (256, 2)  acts on code_dist
    fc_w_text = fc_wT[d_code:]         # (256, 2)  acts on text_emb

    # Fold the svd linear into the fc text column (exact algebra, f32 HIGHEST).
    w_text = jnp.matmul(svd_w.T, fc_w_text,
                        precision=jax.lax.Precision.HIGHEST)          # (1024, 2)
    bias = jnp.matmul(svd_b[None, :], fc_w_text,
                      precision=jax.lax.Precision.HIGHEST)[0] + fc_b  # (2,)

    # Zero-pad the output dimension to 128 lanes for lane-dense stores.
    pad = N_PAD - n_out
    return {
        # MXU operands in bf16 (f32 accumulation in-kernel); bias stays f32.
        "w_code": jnp.pad(fc_w_code, ((0, 0), (0, pad))).astype(jnp.bfloat16),
        "w_text": jnp.pad(w_text, ((0, 0), (0, pad))).astype(jnp.bfloat16),
        "bias": jnp.pad(bias, (0, pad)).reshape(1, N_PAD).astype(jnp.float32),
        "n_out": n_out,
    }


def _round_up(x, m):
    return ((x + m - 1) // m) * m


def _pick_batch_tile(B, block_b, *, min_steps=4, min_tile=256):
    """Batch tile: multiple of 8 (or == B), <= block_b.

    Aims for >= min_steps grid steps (pipeline depth, and sharding across the
    2 TensorCores on v7x via dimension_semantics=("parallel",)) while keeping
    tiles >= ~min_tile rows so the ~0.35 us per-step overhead stays amortized.
    """
    if B <= 8:
        return B                                   # full-dim block, grid=(1,)
    bt = min(block_b, _round_up(B, 8))
    # Prefer >= min_steps steps, but never shrink below min_tile rows.
    target = _round_up(pl.cdiv(B, min_steps), 8)
    bt = min(bt, max(target, min(min_tile, _round_up(B, 8))))
    # Always guarantee >= 2 steps when B allows it (v7x megacore).
    bt = min(bt, _round_up(pl.cdiv(B, 2), 8))
    return bt


def clmn_forward(origin_emb, revised_emb, text_pooler, prepped, *,
                 block_b=512, out_dtype=jnp.bfloat16):
    """Pallas implementation of the CLMN head (svd -> abs-diff -> concat -> fc)."""
    B, d_code = origin_emb.shape
    d_text = text_pooler.shape[1]
    n_out = prepped["n_out"]

    bt = _pick_batch_tile(B, block_b)
    grid = (pl.cdiv(B, bt),)

    # Explicit scoped-VMEM budget: double-buffered input + output tiles plus
    # the resident weights (budgeted 2x for safety), with headroom.
    in_row_bytes = ((origin_emb.dtype.itemsize + revised_emb.dtype.itemsize) * d_code
                    + text_pooler.dtype.itemsize * d_text)
    out_row_bytes = N_PAD * jnp.dtype(out_dtype).itemsize
    w_bytes = ((d_code + d_text) * N_PAD * prepped["w_code"].dtype.itemsize
               + N_PAD * prepped["bias"].dtype.itemsize)
    vmem_need = 2 * bt * (in_row_bytes + out_row_bytes) + 2 * w_bytes
    vmem_limit = int(min(64 << 20, max(16 << 20, vmem_need + (4 << 20))))

    out_padded = pl.pallas_call(
        clmn_head_kernel,
        out_shape=jax.ShapeDtypeStruct((B, N_PAD), out_dtype),
        grid=grid,
        in_specs=[
            pl.BlockSpec((bt, d_code), lambda i: (i, 0)),      # origin_emb
            pl.BlockSpec((bt, d_code), lambda i: (i, 0)),      # revised_emb
            pl.BlockSpec((bt, d_text), lambda i: (i, 0)),      # text_pooler
            # Resident weights: constant index_map, so no per-step re-DMA.
            pl.BlockSpec((d_code, N_PAD), lambda i: (0, 0)),   # w_code (bf16)
            pl.BlockSpec((d_text, N_PAD), lambda i: (0, 0)),   # w_text (bf16)
            pl.BlockSpec((1, N_PAD), lambda i: (0, 0)),        # bias   (f32)
        ],
        out_specs=pl.BlockSpec((bt, N_PAD), lambda i: (i, 0)),
        compiler_params=pltpu.CompilerParams(
            dimension_semantics=("parallel",),
            vmem_limit_bytes=vmem_limit),
    )(origin_emb, revised_emb, text_pooler,
      prepped["w_code"], prepped["w_text"], prepped["bias"])

    return out_padded[:, :n_out].astype(jnp.float32)


def clmn_reference(origin_emb, revised_emb, text_pooler, params):
    """Pure-JAX reference matching PyTorch CLMN semantics exactly (f32)."""
    text_emb = jnp.matmul(text_pooler, params["svd_w"].T,
                          precision=jax.lax.Precision.HIGHEST) + params["svd_b"]
    code_dist = jnp.abs(origin_emb - revised_emb)
    combine = jnp.concatenate([code_dist, text_emb], axis=1)
    return jnp.matmul(combine, params["fc_w"].T,
                      precision=jax.lax.Precision.HIGHEST) + params["fc_b"]


if __name__ == "__main__":
    key = jax.random.PRNGKey(0)
    k = jax.random.split(key, 7)

    # deterministic parameter init (shapes from CLMN.__init__, PyTorch layout)
    params = {
        "svd_w": jax.random.normal(k[3], (256, 1024), dtype=jnp.float32) * 0.02,
        "svd_b": jax.random.normal(k[4], (256,), dtype=jnp.float32) * 0.02,
        "fc_w": jax.random.normal(k[5], (2, 512), dtype=jnp.float32) * 0.02,
        "fc_b": jax.random.normal(k[6], (2,), dtype=jnp.float32) * 0.02,
    }
    prepped = prepare_params(params)   # one-time prep (fold / split / pad / cast)

    # B=2: tiny full-dim block.  B=20: exercises a >=2-step grid with a partial
    # (non-multiple-of-8) final tile -- padding rows are computed then discarded.
    for B in (2, 20):
        kb = jax.random.split(jax.random.fold_in(key, B), 3)
        # Encoder outputs taken as bf16 kernel inputs (halves dominant HBM reads).
        origin_emb = jax.random.normal(kb[0], (B, 256),
                                       dtype=jnp.float32).astype(jnp.bfloat16)
        revised_emb = jax.random.normal(kb[1], (B, 256),
                                        dtype=jnp.float32).astype(jnp.bfloat16)
        text_pooler = jax.random.normal(kb[2], (B, 1024),
                                        dtype=jnp.float32).astype(jnp.bfloat16)

        out = clmn_forward(origin_emb, revised_emb, text_pooler, prepped)
        out = jax.block_until_ready(out)

        ref = clmn_reference(origin_emb.astype(jnp.float32),
                             revised_emb.astype(jnp.float32),
                             text_pooler.astype(jnp.float32), params)
        assert out.shape == (B, 2), out.shape
        # Tolerance covers the svd->fc fold reassociation, bf16 rounding of the
        # MXU operands, and the bf16 padded-output store.
        assert jnp.allclose(out, ref, atol=2e-2, rtol=2e-2), (out, ref)

    print("KERNEL_OK")
</pallas_src>

<mosaic_0001>
module attributes {stable_mosaic.version = 11 : i64} {
  func.func @clmn_head_kernel(%arg0: i32, %arg1: memref<2x256xbf16, #tpu.memory_space<vmem>>, %arg2: memref<2x256xbf16, #tpu.memory_space<vmem>>, %arg3: memref<2x1024xbf16, #tpu.memory_space<vmem>>, %arg4: memref<256x128xbf16, #tpu.memory_space<vmem>>, %arg5: memref<1024x128xbf16, #tpu.memory_space<vmem>>, %arg6: memref<1x128xf32, #tpu.memory_space<vmem>>, %arg7: memref<2x128xbf16, #tpu.memory_space<vmem>>) attributes {dimension_semantics = [#tpu.dimension_semantics<parallel>], iteration_bounds = array<i64: 1>, scalar_prefetch = 0 : i64, scratch_operands = 0 : i64, tpu.core_type = #tpu.core_type<tc>, window_params = [{transform_indices = @transform_0, window_bounds = array<i64: 2, 256>}, {transform_indices = @transform_1, window_bounds = array<i64: 2, 256>}, {transform_indices = @transform_2, window_bounds = array<i64: 2, 1024>}, {pipeline_mode = #tpu.pipeline_mode<synchronous>, transform_indices = @transform_3, window_bounds = array<i64: 256, 128>}, {pipeline_mode = #tpu.pipeline_mode<synchronous>, transform_indices = @transform_4, window_bounds = array<i64: 1024, 128>}, {pipeline_mode = #tpu.pipeline_mode<synchronous>, transform_indices = @transform_5, window_bounds = array<i64: 1, 128>}, {transform_indices = @transform_6, window_bounds = array<i64: 2, 128>}]} {
    %c0 = arith.constant 0 : index
    %c0_0 = arith.constant 0 : index
    %0 = vector.load %arg1[%c0, %c0_0] : memref<2x256xbf16, #tpu.memory_space<vmem>>, vector<2x256xbf16>
    %c0_1 = arith.constant 0 : index
    %c0_2 = arith.constant 0 : index
    %1 = vector.load %arg2[%c0_1, %c0_2] : memref<2x256xbf16, #tpu.memory_space<vmem>>, vector<2x256xbf16>
    %2 = arith.subf %0, %1 : vector<2x256xbf16>
    %3 = math.absf %2 : vector<2x256xbf16>
    %c0_3 = arith.constant 0 : index
    %c0_4 = arith.constant 0 : index
    %4 = vector.load %arg3[%c0_3, %c0_4] : memref<2x1024xbf16, #tpu.memory_space<vmem>>, vector<2x1024xbf16>
    %c0_5 = arith.constant 0 : index
    %c0_6 = arith.constant 0 : index
    %5 = vector.load %arg5[%c0_5, %c0_6] : memref<1024x128xbf16, #tpu.memory_space<vmem>>, vector<1024x128xbf16>
    %cst = arith.constant dense<0.000000e+00> : vector<2x128xf32>
    %6 = tpu.matmul %4, %5, %cst {dimension_numbers = #tpu.dot_dimension_numbers<[1], [0], [0], [1], [0, 0, 1, 1], [], []>} : vector<2x1024xbf16>, vector<1024x128xbf16>, vector<2x128xf32> -> vector<2x128xf32>
    %c0_7 = arith.constant 0 : index
    %c0_8 = arith.constant 0 : index
    %7 = vector.load %arg4[%c0_7, %c0_8] : memref<256x128xbf16, #tpu.memory_space<vmem>>, vector<256x128xbf16>
    %cst_9 = arith.constant dense<0.000000e+00> : vector<2x128xf32>
    %8 = tpu.matmul %3, %7, %cst_9 {dimension_numbers = #tpu.dot_dimension_numbers<[1], [0], [0], [1], [0, 0, 1, 1], [], []>} : vector<2x256xbf16>, vector<256x128xbf16>, vector<2x128xf32> -> vector<2x128xf32>
    %9 = arith.addf %6, %8 : vector<2x128xf32>
    %c0_10 = arith.constant 0 : index
    %c0_11 = arith.constant 0 : index
    %10 = vector.load %arg6[%c0_10, %c0_11] : memref<1x128xf32, #tpu.memory_space<vmem>>, vector<1x128xf32>
    %11 = vector.broadcast %10 : vector<1x128xf32> to vector<2x128xf32>
    %12 = arith.addf %9, %11 : vector<2x128xf32>
    %13 = arith.truncf %12 : vector<2x128xf32> to vector<2x128xbf16>
    %c0_12 = arith.constant 0 : index
    %c0_13 = arith.constant 0 : index
    %14 = vector.load %arg7[%c0_12, %c0_13] : memref<2x128xbf16, #tpu.memory_space<vmem>>, vector<2x128xbf16>
    tpu.vector_store %arg7[%c0_12, %c0_13], %13 {strides = array<i32>} : memref<2x128xbf16, #tpu.memory_space<vmem>>, vector<2x128xbf16>,
    return
  }
  func.func @transform_0(%arg0: i32) -> (i32, i32) {
    %c0_i32 = arith.constant 0 : i32
    %c0_i32_0 = arith.constant 0 : i32
    return %arg0, %c0_i32 : i32, i32
  }
  func.func @transform_1(%arg0: i32) -> (i32, i32) {
    %c0_i32 = arith.constant 0 : i32
    %c0_i32_0 = arith.constant 0 : i32
    return %arg0, %c0_i32 : i32, i32
  }
  func.func @transform_2(%arg0: i32) -> (i32, i32) {
    %c0_i32 = arith.constant 0 : i32
    %c0_i32_0 = arith.constant 0 : i32
    return %arg0, %c0_i32 : i32, i32
  }
  func.func @transform_3(%arg0: i32) -> (i32, i32) {
    %c0_i32 = arith.constant 0 : i32
    %c0_i32_0 = arith.constant 0 : i32
    %c0_i32_1 = arith.constant 0 : i32
    return %c0_i32, %c0_i32_0 : i32, i32
  }
  func.func @transform_4(%arg0: i32) -> (i32, i32) {
    %c0_i32 = arith.constant 0 : i32
    %c0_i32_0 = arith.constant 0 : i32
    %c0_i32_1 = arith.constant 0 : i32
    return %c0_i32, %c0_i32_0 : i32, i32
  }
  func.func @transform_5(%arg0: i32) -> (i32, i32) {
    %c0_i32 = arith.constant 0 : i32
    %c0_i32_0 = arith.constant 0 : i32
    %c0_i32_1 = arith.constant 0 : i32
    return %c0_i32, %c0_i32_0 : i32, i32
  }
  func.func @transform_6(%arg0: i32) -> (i32, i32) {
    %c0_i32 = arith.constant 0 : i32
    %c0_i32_0 = arith.constant 0 : i32
    return %arg0, %c0_i32 : i32, i32
  }
}

</mosaic_0001>

<llo_original>
// kernel: tpu_custom_call.1
$region0: #{tpu_custom_call.1}
  #allocation0 [shape = 'u32[]', space=smem, size = 0x4, offset = 0x4, fixed_abs, tag = 'smem constant byte address 0x4 - core index']
  #allocation1 [shape = 'u32[144,128]{1,0:T(1,128)}', space=vmem, size = 0x12000, scoped, tag = 'internal scratch']
  %s0 = inlined_call_operand.hbm [shape: bf16[2,256], index: 0, kind: input, shape index: {}]
  %s1 = inlined_call_operand.hbm [shape: bf16[2,256], index: 1, kind: input, shape index: {}]
  %s2 = inlined_call_operand.hbm [shape: bf16[2,1024], index: 2, kind: input, shape index: {}]
  %s3 = inlined_call_operand.hbm [shape: bf16[256,128], index: 3, kind: input, shape index: {}]
  %s4 = inlined_call_operand.hbm [shape: bf16[1024,128], index: 4, kind: input, shape index: {}]
  %s5 = inlined_call_operand.vmem [shape: f32[1,128], index: 5, kind: input, shape index: {}]
  %s6 = inlined_call_operand.hbm [shape: bf16[2,128], index: 6, kind: output, shape index: {}]
  %s7 = sld [smem:[#allocation0]]
  $region54: #{tpu_custom_call.1} parent=0
    _
  %s9 = ssub.s32 1, %s7
  %s10 = scalar_select 0, %s9, %s7
  $region1: #{tpu_custom_call.1} parent=0
    #allocation2 [shape = 'u8[1024]{0}', space=vmem, size = 0x400, scoped, tag = 'input window, operand 0, single buffered']
    #allocation3 [shape = 's32[1]{0}', space=sflag, size = 0x4, scoped, tag = 'scoped memory for tpu_custom_call.1']
    #allocation4 [shape = 's32[1]{0}', space=sflag, size = 0x4, scoped, tag = 'scoped memory for tpu_custom_call.1']
    #allocation5 [shape = 'u8[1024]{0}', space=vmem, size = 0x400, scoped, tag = 'input window, operand 1, single buffered']
    #allocation6 [shape = 's32[1]{0}', space=sflag, size = 0x4, scoped, tag = 'scoped memory for tpu_custom_call.1']
    #allocation7 [shape = 'u8[4096]{0}', space=vmem, size = 0x1000, scoped, tag = 'input window, operand 2, single buffered']
    #allocation8 [shape = 'u8[65536]{0}', space=vmem, size = 0x10000, scoped, tag = 'input window, operand 3, single buffered']
    #allocation9 [shape = 's32[1]{0}', space=sflag, size = 0x4, scoped, tag = 'scoped memory for tpu_custom_call.1']
    #allocation10 [shape = 'u8[262144]{0}', space=vmem, size = 0x40000, scoped, tag = 'input window, operand 4, single buffered']
    #allocation11 [shape = 'u8[512]{0}', space=vmem, size = 0x400, scoped, tag = 'output window, operand 0, single buffered']
    %11 = vsyncpa [#allocation3], 0
    %12 = vsyncpa [#allocation6], 0
    %13 = vsyncpa [#allocation9], 0
    %14 = vsyncpa [#allocation4], 0
    // Predicated region
    $region2: #{tpu_custom_call.1} parent=1 // pred_check
      _
    $region3: #{tpu_custom_call.1} parent=1 // pred_check_branch
      %16 = sbr.rel (0) target = $region5
    $region4: #{tpu_custom_call.1} parent=1 // pred_region
      %s18 = ssub.s32 32, 32
      %19 = vsyncadd [#allocation3], %s18
      %s21 = sshll.u32 [#allocation2], 4
      %s22 = int_to_ptr.vmem [resolvable:$true] %s21
      %24 = dma.hbm_to_vmem [thread:$0]  %s0, 32, %s22, [#allocation3]
    $region5: #{tpu_custom_call.1} parent=1 // pred_fallthru
      _
    // Predicated region
    $region6: #{tpu_custom_call.1} parent=1 // pred_check
      _
    $region7: #{tpu_custom_call.1} parent=1 // pred_check_branch
      %26 = sbr.rel (0) target = $region9
    $region8: #{tpu_custom_call.1} parent=1 // pred_region
      %s28 = ssub.s32 32, 32
      %29 = vsyncadd [#allocation6], %s28
      %s31 = sshll.u32 [#allocation5], 4
      %s32 = int_to_ptr.vmem [resolvable:$true] %s31
      %34 = dma.hbm_to_vmem [thread:$0]  %s1, 32, %s32, [#allocation6]
    $region9: #{tpu_custom_call.1} parent=1 // pred_fallthru
      _
    // Predicated region
    $region10: #{tpu_custom_call.1} parent=1 // pred_check
      _
    $region11: #{tpu_custom_call.1} parent=1 // pred_check_branch
      %36 = sbr.rel (0) target = $region13
    $region12: #{tpu_custom_call.1} parent=1 // pred_region
      %s38 = ssub.s32 128, 128
      %39 = vsyncadd [#allocation6], %s38
      %s41 = sshll.u32 [#allocation7], 4
      %s42 = int_to_ptr.vmem [resolvable:$true] %s41
      %44 = dma.hbm_to_vmem [thread:$0]  %s2, 128, %s42, [#allocation6]
    $region13: #{tpu_custom_call.1} parent=1 // pred_fallthru
      _
    // Predicated region
    $region14: #{tpu_custom_call.1} parent=1 // pred_check
      _
    $region15: #{tpu_custom_call.1} parent=1 // pred_check_branch
      %46 = sbr.rel (0) target = $region17
    $region16: #{tpu_custom_call.1} parent=1 // pred_region
      %s48 = ssub.s32 2048, 2048
      %49 = vsyncadd [#allocation9], %s48
      %s50 = sshll.u32 [#allocation8], 4
      %s51 = int_to_ptr.vmem [resolvable:$true] %s50
      %56 = dma.hbm_to_vmem [thread:$0]  %s3, 2048, %s51, [#allocation9], 64, 64, 4
    $region17: #{tpu_custom_call.1} parent=1 // pred_fallthru
      _
    // Predicated region
    $region18: #{tpu_custom_call.1} parent=1 // pred_check
      _
    $region19: #{tpu_custom_call.1} parent=1 // pred_check_branch
      %58 = sbr.rel (0) target = $region21
    $region20: #{tpu_custom_call.1} parent=1 // pred_region
      %s60 = ssub.s32 8192, 8192
      %61 = vsyncadd [#allocation9], %s60
      %s62 = sshll.u32 [#allocation10], 4
      %s63 = int_to_ptr.vmem [resolvable:$true] %s62
      %68 = dma.hbm_to_vmem [thread:$0]  %s4, 8192, %s63, [#allocation9], 64, 64, 4
    $region21: #{tpu_custom_call.1} parent=1 // pred_fallthru
      _
    // Predicated region
    $region22: #{tpu_custom_call.1} parent=1 // pred_check
      _
    $region23: #{tpu_custom_call.1} parent=1 // pred_check_branch
      %70 = sbr.rel (0) target = $region25
    $region24: #{tpu_custom_call.1} parent=1 // pred_region
      _
    $region25: #{tpu_custom_call.1} parent=1 // pred_fallthru
      _
    // Predicated region
    $region26: #{tpu_custom_call.1} parent=1 // pred_check
      _
    $region27: #{tpu_custom_call.1} parent=1 // pred_check_branch
      %72 = sbr.rel (0) target = $region29
    $region28: #{tpu_custom_call.1} parent=1 // pred_region
      %73 = dma.done [#allocation3], 32
    $region29: #{tpu_custom_call.1} parent=1 // pred_fallthru
      _
    // Predicated region
    $region30: #{tpu_custom_call.1} parent=1 // pred_check
      _
    $region31: #{tpu_custom_call.1} parent=1 // pred_check_branch
      %75 = sbr.rel (0) target = $region33
    $region32: #{tpu_custom_call.1} parent=1 // pred_region
      %76 = dma.done [#allocation6], 32
    $region33: #{tpu_custom_call.1} parent=1 // pred_fallthru
      _
    // Predicated region
    $region34: #{tpu_custom_call.1} parent=1 // pred_check
      _
    $region35: #{tpu_custom_call.1} parent=1 // pred_check_branch
      %78 = sbr.rel (0) target = $region37
    $region36: #{tpu_custom_call.1} parent=1 // pred_region
      %79 = dma.done [#allocation6], 128
    $region37: #{tpu_custom_call.1} parent=1 // pred_fallthru
      _
    // Predicated region
    $region38: #{tpu_custom_call.1} parent=1 // pred_check
      _
    $region39: #{tpu_custom_call.1} parent=1 // pred_check_branch
      %81 = sbr.rel (0) target = $region41
    $region40: #{tpu_custom_call.1} parent=1 // pred_region
      %82 = dma.done [#allocation9], 2048
    $region41: #{tpu_custom_call.1} parent=1 // pred_fallthru
      _
    // Predicated region
    $region42: #{tpu_custom_call.1} parent=1 // pred_check
      _
    $region43: #{tpu_custom_call.1} parent=1 // pred_check_branch
      %84 = sbr.rel (0) target = $region45
    $region44: #{tpu_custom_call.1} parent=1 // pred_region
      %85 = dma.done [#allocation9], 8192
    $region45: #{tpu_custom_call.1} parent=1 // pred_fallthru
      _
    %v87 = vld [vmem:[#allocation2] sm:$0x3]
    %v88 = vld [vmem:[#allocation5] sm:$0x3]
    %v89 = vsub.bf16 %v87, %v88
    %v90 = vand.u32 2147450879, %v89
    %v91 = vld [vmem:[#allocation7] sm:$0xff]
    %v92 = vld [vmem:[#allocation10] sm:$0xf]
    %v93 = vld [vmem:[#allocation10 + $0x4] sm:$0xf]
    %v94 = vld [vmem:[#allocation10 + $0x8] sm:$0xf]
    %v95 = vld [vmem:[#allocation10 + $0xc] sm:$0xf]
    %v96 = vld [vmem:[#allocation10 + $0x10] sm:$0xf]
    %v97 = vld [vmem:[#allocation10 + $0x14] sm:$0xf]
    %v98 = vld [vmem:[#allocation10 + $0x18] sm:$0xf]
    %v99 = vld [vmem:[#allocation10 + $0x1c] sm:$0xf]
    %v100 = vld [vmem:[#allocation10 + $0x20] sm:$0xf]
    %v101 = vld [vmem:[#allocation10 + $0x24] sm:$0xf]
    %v102 = vld [vmem:[#allocation10 + $0x28] sm:$0xf]
    %v103 = vld [vmem:[#allocation10 + $0x2c] sm:$0xf]
    %v104 = vld [vmem:[#allocation10 + $0x30] sm:$0xf]
    %v105 = vld [vmem:[#allocation10 + $0x34] sm:$0xf]
    %v106 = vld [vmem:[#allocation10 + $0x38] sm:$0xf]
    %v107 = vld [vmem:[#allocation10 + $0x3c] sm:$0xf]
    %v108 = vld [vmem:[#allocation10 + $0x40] sm:$0xf]
    %v109 = vld [vmem:[#allocation10 + $0x44] sm:$0xf]
    %v110 = vld [vmem:[#allocation10 + $0x48] sm:$0xf]
    %v111 = vld [vmem:[#allocation10 + $0x4c] sm:$0xf]
    %v112 = vld [vmem:[#allocation10 + $0x50] sm:$0xf]
    %v113 = vld [vmem:[#allocation10 + $0x54] sm:$0xf]
    %v114 = vld [vmem:[#allocation10 + $0x58] sm:$0xf]
    %v115 = vld [vmem:[#allocation10 + $0x5c] sm:$0xf]
    %v116 = vld [vmem:[#allocation10 + $0x60] sm:$0xf]
    %v117 = vld [vmem:[#allocation10 + $0x64] sm:$0xf]
    %v118 = vld [vmem:[#allocation10 + $0x68] sm:$0xf]
    %v119 = vld [vmem:[#allocation10 + $0x6c] sm:$0xf]
    %v120 = vld [vmem:[#allocation10 + $0x70] sm:$0xf]
    %v121 = vld [vmem:[#allocation10 + $0x74] sm:$0xf]
    %v122 = vld [vmem:[#allocation10 + $0x78] sm:$0xf]
    %v123 = vld [vmem:[#allocation10 + $0x7c] sm:$0xf]
    %v124 = vld [vmem:[#allocation10 + $0x80] sm:$0xf]
    %v125 = vld [vmem:[#allocation10 + $0x84] sm:$0xf]
    %v126 = vld [vmem:[#allocation10 + $0x88] sm:$0xf]
    %v127 = vld [vmem:[#allocation10 + $0x8c] sm:$0xf]
    %v128 = vld [vmem:[#allocation10 + $0x90] sm:$0xf]
    %v129 = vld [vmem:[#allocation10 + $0x94] sm:$0xf]
    %v130 = vld [vmem:[#allocation10 + $0x98] sm:$0xf]
    %v131 = vld [vmem:[#allocation10 + $0x9c] sm:$0xf]
    %v132 = vld [vmem:[#allocation10 + $0xa0] sm:$0xf]
    %v133 = vld [vmem:[#allocation10 + $0xa4] sm:$0xf]
    %v134 = vld [vmem:[#allocation10 + $0xa8] sm:$0xf]
    %v135 = vld [vmem:[#allocation10 + $0xac] sm:$0xf]
    %v136 = vld [vmem:[#allocation10 + $0xb0] sm:$0xf]
    %v137 = vld [vmem:[#allocation10 + $0xb4] sm:$0xf]
    %v138 = vld [vmem:[#allocation10 + $0xb8] sm:$0xf]
    %v139 = vld [vmem:[#allocation10 + $0xbc] sm:$0xf]
    %v140 = vld [vmem:[#allocation10 + $0xc0] sm:$0xf]
    %v141 = vld [vmem:[#allocation10 + $0xc4] sm:$0xf]
    %v142 = vld [vmem:[#allocation10 + $0xc8] sm:$0xf]
    %v143 = vld [vmem:[#allocation10 + $0xcc] sm:$0xf]
    %v144 = vld [vmem:[#allocation10 + $0xd0] sm:$0xf]
    %v145 = vld [vmem:[#allocation10 + $0xd4] sm:$0xf]
    %v146 = vld [vmem:[#allocation10 + $0xd8] sm:$0xf]
    %v147 = vld [vmem:[#allocation10 + $0xdc] sm:$0xf]
    %v148 = vld [vmem:[#allocation10 + $0xe0] sm:$0xf]
    %v149 = vld [vmem:[#allocation10 + $0xe4] sm:$0xf]
    %v150 = vld [vmem:[#allocation10 + $0xe8] sm:$0xf]
    %v151 = vld [vmem:[#allocation10 + $0xec] sm:$0xf]
    %v152 = vld [vmem:[#allocation10 + $0xf0] sm:$0xf]
    %v153 = vld [vmem:[#allocation10 + $0xf4] sm:$0xf]
    %v154 = vld [vmem:[#allocation10 + $0xf8] sm:$0xf]
    %v155 = vld [vmem:[#allocation10 + $0xfc] sm:$0xf]
    %v156 = vld [vmem:[#allocation10 + $0x100] sm:$0xf]
    %v157 = vld [vmem:[#allocation10 + $0x104] sm:$0xf]
    %v158 = vld [vmem:[#allocation10 + $0x108] sm:$0xf]
    %v159 = vld [vmem:[#allocation10 + $0x10c] sm:$0xf]
    %v160 = vld [vmem:[#allocation10 + $0x110] sm:$0xf]
    %v161 = vld [vmem:[#allocation10 + $0x114] sm:$0xf]
    %v162 = vld [vmem:[#allocation10 + $0x118] sm:$0xf]
    %v163 = vld [vmem:[#allocation10 + $0x11c] sm:$0xf]
    %v164 = vld [vmem:[#allocation10 + $0x120] sm:$0xf]
    %v165 = vld [vmem:[#allocation10 + $0x124] sm:$0xf]
    %v166 = vld [vmem:[#allocation10 + $0x128] sm:$0xf]
    %v167 = vld [vmem:[#allocation10 + $0x12c] sm:$0xf]
    %v168 = vld [vmem:[#allocation10 + $0x130] sm:$0xf]
    %v169 = vld [vmem:[#allocation10 + $0x134] sm:$0xf]
    %v170 = vld [vmem:[#allocation10 + $0x138] sm:$0xf]
    %v171 = vld [vmem:[#allocation10 + $0x13c] sm:$0xf]
    %v172 = vld [vmem:[#allocation10 + $0x140] sm:$0xf]
    %v173 = vld [vmem:[#allocation10 + $0x144] sm:$0xf]
    %v174 = vld [vmem:[#allocation10 + $0x148] sm:$0xf]
    %v175 = vld [vmem:[#allocation10 + $0x14c] sm:$0xf]
    %v176 = vld [vmem:[#allocation10 + $0x150] sm:$0xf]
    %v177 = vld [vmem:[#allocation10 + $0x154] sm:$0xf]
    %v178 = vld [vmem:[#allocation10 + $0x158] sm:$0xf]
    %v179 = vld [vmem:[#allocation10 + $0x15c] sm:$0xf]
    %v180 = vld [vmem:[#allocation10 + $0x160] sm:$0xf]
    %v181 = vld [vmem:[#allocation10 + $0x164] sm:$0xf]
    %v182 = vld [vmem:[#allocation10 + $0x168] sm:$0xf]
    %v183 = vld [vmem:[#allocation10 + $0x16c] sm:$0xf]
    %v184 = vld [vmem:[#allocation10 + $0x170] sm:$0xf]
    %v185 = vld [vmem:[#allocation10 + $0x174] sm:$0xf]
    %v186 = vld [vmem:[#allocation10 + $0x178] sm:$0xf]
    %v187 = vld [vmem:[#allocation10 + $0x17c] sm:$0xf]
    %v188 = vld [vmem:[#allocation10 + $0x180] sm:$0xf]
    %v189 = vld [vmem:[#allocation10 + $0x184] sm:$0xf]
    %v190 = vld [vmem:[#allocation10 + $0x188] sm:$0xf]
    %v191 = vld [vmem:[#allocation10 + $0x18c] sm:$0xf]
    %v192 = vld [vmem:[#allocation10 + $0x190] sm:$0xf]
    %v193 = vld [vmem:[#allocation10 + $0x194] sm:$0xf]
    %v194 = vld [vmem:[#allocation10 + $0x198] sm:$0xf]
    %v195 = vld [vmem:[#allocation10 + $0x19c] sm:$0xf]
    %v196 = vld [vmem:[#allocation10 + $0x1a0] sm:$0xf]
    %v197 = vld [vmem:[#allocation10 + $0x1a4] sm:$0xf]
    %v198 = vld [vmem:[#allocation10 + $0x1a8] sm:$0xf]
    %v199 = vld [vmem:[#allocation10 + $0x1ac] sm:$0xf]
    %v200 = vld [vmem:[#allocation10 + $0x1b0] sm:$0xf]
    %v201 = vld [vmem:[#allocation10 + $0x1b4] sm:$0xf]
    %v202 = vld [vmem:[#allocation10 + $0x1b8] sm:$0xf]
    %v203 = vld [vmem:[#allocation10 + $0x1bc] sm:$0xf]
    %v204 = vld [vmem:[#allocation10 + $0x1c0] sm:$0xf]
    %v205 = vld [vmem:[#allocation10 + $0x1c4] sm:$0xf]
    %v206 = vld [vmem:[#allocation10 + $0x1c8] sm:$0xf]
    %v207 = vld [vmem:[#allocation10 + $0x1cc] sm:$0xf]
    %v208 = vld [vmem:[#allocation10 + $0x1d0] sm:$0xf]
    %v209 = vld [vmem:[#allocation10 + $0x1d4] sm:$0xf]
    %v210 = vld [vmem:[#allocation10 + $0x1d8] sm:$0xf]
    %v211 = vld [vmem:[#allocation10 + $0x1dc] sm:$0xf]
    %v212 = vld [vmem:[#allocation10 + $0x1e0] sm:$0xf]
    %v213 = vld [vmem:[#allocation10 + $0x1e4] sm:$0xf]
    %v214 = vld [vmem:[#allocation10 + $0x1e8] sm:$0xf]
    %v215 = vld [vmem:[#allocation10 + $0x1ec] sm:$0xf]
    %v216 = vld [vmem:[#allocation10 + $0x1f0] sm:$0xf]
    %v217 = vld [vmem:[#allocation10 + $0x1f4] sm:$0xf]
    %v218 = vld [vmem:[#allocation10 + $0x1f8] sm:$0xf]
    %v219 = vld [vmem:[#allocation10 + $0x1fc] sm:$0xf]
    %v220 = vld [vmem:[#allocation8] sm:$0xf]
    %v221 = vld [vmem:[#allocation8 + $0x4] sm:$0xf]
    %v222 = vld [vmem:[#allocation8 + $0x8] sm:$0xf]
    %v223 = vld [vmem:[#allocation8 + $0xc] sm:$0xf]
    %v224 = vld [vmem:[#allocation8 + $0x10] sm:$0xf]
    %v225 = vld [vmem:[#allocation8 + $0x14] sm:$0xf]
    %v226 = vld [vmem:[#allocation8 + $0x18] sm:$0xf]
    %v227 = vld [vmem:[#allocation8 + $0x1c] sm:$0xf]
    %v228 = vld [vmem:[#allocation8 + $0x20] sm:$0xf]
    %v229 = vld [vmem:[#allocation8 + $0x24] sm:$0xf]
    %v230 = vld [vmem:[#allocation8 + $0x28] sm:$0xf]
    %v231 = vld [vmem:[#allocation8 + $0x2c] sm:$0xf]
    %v232 = vld [vmem:[#allocation8 + $0x30] sm:$0xf]
    %v233 = vld [vmem:[#allocation8 + $0x34] sm:$0xf]
    %v234 = vld [vmem:[#allocation8 + $0x38] sm:$0xf]
    %v235 = vld [vmem:[#allocation8 + $0x3c] sm:$0xf]
    %v236 = vld [vmem:[#allocation8 + $0x40] sm:$0xf]
    %v237 = vld [vmem:[#allocation8 + $0x44] sm:$0xf]
    %v238 = vld [vmem:[#allocation8 + $0x48] sm:$0xf]
    %v239 = vld [vmem:[#allocation8 + $0x4c] sm:$0xf]
    %v240 = vld [vmem:[#allocation8 + $0x50] sm:$0xf]
    %v241 = vld [vmem:[#allocation8 + $0x54] sm:$0xf]
    %v242 = vld [vmem:[#allocation8 + $0x58] sm:$0xf]
    %v243 = vld [vmem:[#allocation8 + $0x5c] sm:$0xf]
    %v244 = vld [vmem:[#allocation8 + $0x60] sm:$0xf]
    %v245 = vld [vmem:[#allocation8 + $0x64] sm:$0xf]
    %v246 = vld [vmem:[#allocation8 + $0x68] sm:$0xf]
    %v247 = vld [vmem:[#allocation8 + $0x6c] sm:$0xf]
    %v248 = vld [vmem:[#allocation8 + $0x70] sm:$0xf]
    %v249 = vld [vmem:[#allocation8 + $0x74] sm:$0xf]
    %v250 = vld [vmem:[#allocation8 + $0x78] sm:$0xf]
    %v251 = vld [vmem:[#allocation8 + $0x7c] sm:$0xf]
    %v254 = vunpack.c.l.s4 1966171168
    %v255 = vunpack.c.0.s8 %v254
    %v256 = vlaneseq
    %v257 = vshrl.u32 %v256, 7
    %v258 = vsub.s32 %v255, %v257
    %v259 = vrot.slane %v90, %v258
    %v260 = vcombine.high %v259, %v259
    %v262 = vunpack.c.l.s4 1966171168
    %v263 = vunpack.c.0.s8 %v262
    %v264 = vlaneseq
    %v265 = vshrl.u32 %v264, 7
    %v266 = vsub.s32 %v263, %v265
    %v267 = vrot.slane %v259, %v266
    %v269 = vunpack.c.l.s4 1966171168
    %v270 = vunpack.c.0.s8 %v269
    %v271 = vlaneseq
    %v272 = vshrl.u32 %v271, 7
    %v273 = vsub.s32 %v270, %v272
    %v274 = vrot.slane %v260, %v273
    %v309 = vunpack.c.l.b16 %v220
    %v310 = vunpack.c.l.b16 %v221
    %v311 = vunpack.c.l.b16 %v222
    %v312 = vunpack.c.l.b16 %v223
    %v313 = vunpack.c.l.b16 %v224
    %v314 = vunpack.c.l.b16 %v225
    %v315 = vunpack.c.l.b16 %v226
    %v316 = vunpack.c.l.b16 %v227
    %v317 = vunpack.c.l.b16 %v228
    %v318 = vunpack.c.l.b16 %v229
    %v319 = vunpack.c.l.b16 %v230
    %v320 = vunpack.c.l.b16 %v231
    %v321 = vunpack.c.l.b16 %v232
    %v322 = vunpack.c.l.b16 %v233
    %v323 = vunpack.c.l.b16 %v234
    %v324 = vunpack.c.l.b16 %v235
    %v325 = vunpack.c.l.b16 %v236
    %v326 = vunpack.c.l.b16 %v237
    %v327 = vunpack.c.l.b16 %v238
    %v328 = vunpack.c.l.b16 %v239
    %v329 = vunpack.c.l.b16 %v240
    %v330 = vunpack.c.l.b16 %v241
    %v331 = vunpack.c.l.b16 %v242
    %v332 = vunpack.c.l.b16 %v243
    %v333 = vunpack.c.l.b16 %v244
    %v334 = vunpack.c.l.b16 %v245
    %v335 = vunpack.c.l.b16 %v246
    %v336 = vunpack.c.l.b16 %v247
    %v337 = vunpack.c.l.b16 %v248
    %v338 = vunpack.c.l.b16 %v249
    %v339 = vunpack.c.l.b16 %v250
    %v340 = vunpack.c.l.b16 %v251
    %v341 = vpack.c.b16 %v310, %v309
    %v342 = vpack.c.b16 %v312, %v311
    %v343 = vpack.c.b16 %v314, %v313
    %v344 = vpack.c.b16 %v316, %v315
    %v345 = vpack.c.b16 %v318, %v317
    %v346 = vpack.c.b16 %v320, %v319
    %v347 = vpack.c.b16 %v322, %v321
    %v348 = vpack.c.b16 %v324, %v323
    %v349 = vpack.c.b16 %v326, %v325
    %v350 = vpack.c.b16 %v328, %v327
    %v351 = vpack.c.b16 %v330, %v329
    %v352 = vpack.c.b16 %v332, %v331
    %v353 = vpack.c.b16 %v334, %v333
    %v354 = vpack.c.b16 %v336, %v335
    %v355 = vpack.c.b16 %v338, %v337
    %v356 = vpack.c.b16 %v340, %v339
    %373 = vmatprep.subr.bf16.mxu0 0
    %374 = vmatpush1.bf16.msra.mxu0 %v348
    %375 = vmatprep.subr.bf16.mxu0 0
    %376 = vmatpush1.bf16.msra.mxu0 %v347
    %377 = vmatprep.subr.bf16.mxu0 0
    %378 = vmatpush1.bf16.msra.mxu0 %v346
    %379 = vmatprep.subr.bf16.mxu0 0
    %380 = vmatpush1.bf16.msra.mxu0 %v345
    %381 = vmatprep.subr.bf16.mxu0 0
    %382 = vmatpush1.bf16.msra.mxu0 %v344
    %383 = vmatprep.subr.bf16.mxu0 0
    %384 = vmatpush1.bf16.msra.mxu0 %v343
    %385 = vmatprep.subr.bf16.mxu0 0
    %386 = vmatpush1.bf16.msra.mxu0 %v342
    %387 = vmatprep.subr.bf16.mxu0 0
    %388 = vmatpush1.bf16.msra.mxu0 %v341
    %389 = vmatprep.subr.bf16.mxu0 0
    %390 = vmatpush2.bf16.msra.mxu0 %v356
    %391 = vmatprep.subr.bf16.mxu0 0
    %392 = vmatpush2.bf16.msra.mxu0 %v355
    %393 = vmatprep.subr.bf16.mxu0 0
    %394 = vmatpush2.bf16.msra.mxu0 %v354
    %395 = vmatprep.subr.bf16.mxu0 0
    %396 = vmatpush2.bf16.msra.mxu0 %v353
    %397 = vmatprep.subr.bf16.mxu0 0
    %398 = vmatpush2.bf16.msra.mxu0 %v352
    %399 = vmatprep.subr.bf16.mxu0 0
    %400 = vmatpush2.bf16.msra.mxu0 %v351
    %401 = vmatprep.subr.bf16.mxu0 0
    %402 = vmatpush2.bf16.msra.mxu0 %v350
    %403 = vmatprep.subr.bf16.mxu0 0
    %404 = vmatpush2.bf16.msra.mxu0 %v349
    %405 = vmatprep.mubr.bf16.mxu0 %v274
    %406 = vmatmul.mubr.bf16.gmra.mxu0 %v267
    %v407 = vpop.f32.mrf.mxu0
    %v408 = vadd.f32 0.0, %v407
    %v409 = vpop.f32.mrf.mxu0
    %v410 = vpop.f32.mrf.mxu0
    %v411 = vpop.f32.mrf.mxu0
    %412 = vdwg.mxu0
    %v414 = vcombine.high %v91, %v91
    %v416 = vunpack.c.l.s4 1966171168
    %v417 = vunpack.c.0.s8 %v416
    %v418 = vlaneseq
    %v419 = vshrl.u32 %v418, 7
    %v420 = vsub.s32 %v417, %v419
    %v421 = vrot.slane %v91, %v420
    %v423 = vunpack.c.l.s4 1966171168
    %v424 = vunpack.c.0.s8 %v423
    %v425 = vlaneseq
    %v426 = vshrl.u32 %v425, 7
    %v427 = vsub.s32 %v424, %v426
    %v428 = vrot.slane %v414, %v427
    %v429 = vcombine.high %v421, %v421
    %v430 = vcombine.high %v428, %v428
    %v432 = vunpack.c.l.s4 1966171168
    %v433 = vunpack.c.0.s8 %v432
    %v434 = vlaneseq
    %v435 = vshrl.u32 %v434, 7
    %v436 = vsub.s32 %v433, %v435
    %v437 = vrot.slane %v421, %v436
    %v439 = vunpack.c.l.s4 1966171168
    %v440 = vunpack.c.0.s8 %v439
    %v441 = vlaneseq
    %v442 = vshrl.u32 %v441, 7
    %v443 = vsub.s32 %v440, %v442
    %v444 = vrot.slane %v428, %v443
    %v446 = vunpack.c.l.s4 1966171168
    %v447 = vunpack.c.0.s8 %v446
    %v448 = vlaneseq
    %v449 = vshrl.u32 %v448, 7
    %v450 = vsub.s32 %v447, %v449
    %v451 = vrot.slane %v429, %v450
    %v453 = vunpack.c.l.s4 1966171168
    %v454 = vunpack.c.0.s8 %v453
    %v455 = vlaneseq
    %v456 = vshrl.u32 %v455, 7
    %v457 = vsub.s32 %v454, %v456
    %v458 = vrot.slane %v430, %v457
    %v459 = vcombine.high %v437, %v437
    %v460 = vcombine.high %v444, %v444
    %v461 = vcombine.high %v451, %v451
    %v462 = vcombine.high %v458, %v458
    %v599 = vunpack.c.l.b16 %v92
    %v600 = vunpack.c.l.b16 %v93
    %v601 = vunpack.c.l.b16 %v94
    %v602 = vunpack.c.l.b16 %v95
    %v603 = vunpack.c.l.b16 %v96
    %v604 = vunpack.c.l.b16 %v97
    %v605 = vunpack.c.l.b16 %v98
    %v606 = vunpack.c.l.b16 %v99
    %v607 = vunpack.c.l.b16 %v100
    %v608 = vunpack.c.l.b16 %v101
    %v609 = vunpack.c.l.b16 %v102
    %v610 = vunpack.c.l.b16 %v103
    %v611 = vunpack.c.l.b16 %v104
    %v612 = vunpack.c.l.b16 %v105
    %v613 = vunpack.c.l.b16 %v106
    %v614 = vunpack.c.l.b16 %v107
    %v615 = vunpack.c.l.b16 %v108
    %v616 = vunpack.c.l.b16 %v109
    %v617 = vunpack.c.l.b16 %v110
    %v618 = vunpack.c.l.b16 %v111
    %v619 = vunpack.c.l.b16 %v112
    %v620 = vunpack.c.l.b16 %v113
    %v621 = vunpack.c.l.b16 %v114
    %v622 = vunpack.c.l.b16 %v115
    %v623 = vunpack.c.l.b16 %v116
    %v624 = vunpack.c.l.b16 %v117
    %v625 = vunpack.c.l.b16 %v118
    %v626 = vunpack.c.l.b16 %v119
    %v627 = vunpack.c.l.b16 %v120
    %v628 = vunpack.c.l.b16 %v121
    %v629 = vunpack.c.l.b16 %v122
    %v630 = vunpack.c.l.b16 %v123
    %v631 = vunpack.c.l.b16 %v124
    %v632 = vunpack.c.l.b16 %v125
    %v633 = vunpack.c.l.b16 %v126
    %v634 = vunpack.c.l.b16 %v127
    %v635 = vunpack.c.l.b16 %v128
    %v636 = vunpack.c.l.b16 %v129
    %v637 = vunpack.c.l.b16 %v130
    %v638 = vunpack.c.l.b16 %v131
    %v639 = vunpack.c.l.b16 %v132
    %v640 = vunpack.c.l.b16 %v133
    %v641 = vunpack.c.l.b16 %v134
    %v642 = vunpack.c.l.b16 %v135
    %v643 = vunpack.c.l.b16 %v136
    %v644 = vunpack.c.l.b16 %v137
    %v645 = vunpack.c.l.b16 %v138
    %v646 = vunpack.c.l.b16 %v139
    %v647 = vunpack.c.l.b16 %v140
    %v648 = vunpack.c.l.b16 %v141
    %v649 = vunpack.c.l.b16 %v142
    %v650 = vunpack.c.l.b16 %v143
    %v651 = vunpack.c.l.b16 %v144
    %v652 = vunpack.c.l.b16 %v145
    %v653 = vunpack.c.l.b16 %v146
    %v654 = vunpack.c.l.b16 %v147
    %v655 = vunpack.c.l.b16 %v148
    %v656 = vunpack.c.l.b16 %v149
    %v657 = vunpack.c.l.b16 %v150
    %v658 = vunpack.c.l.b16 %v151
    %v659 = vunpack.c.l.b16 %v152
    %v660 = vunpack.c.l.b16 %v153
    %v661 = vunpack.c.l.b16 %v154
    %v662 = vunpack.c.l.b16 %v155
    %v663 = vunpack.c.l.b16 %v156
    %v664 = vunpack.c.l.b16 %v157
    %v665 = vunpack.c.l.b16 %v158
    %v666 = vunpack.c.l.b16 %v159
    %v667 = vunpack.c.l.b16 %v160
    %v668 = vunpack.c.l.b16 %v161
    %v669 = vunpack.c.l.b16 %v162
    %v670 = vunpack.c.l.b16 %v163
    %v671 = vunpack.c.l.b16 %v164
    %v672 = vunpack.c.l.b16 %v165
    %v673 = vunpack.c.l.b16 %v166
    %v674 = vunpack.c.l.b16 %v167
    %v675 = vunpack.c.l.b16 %v168
    %v676 = vunpack.c.l.b16 %v169
    %v677 = vunpack.c.l.b16 %v170
    %v678 = vunpack.c.l.b16 %v171
    %v679 = vunpack.c.l.b16 %v172
    %v680 = vunpack.c.l.b16 %v173
    %v681 = vunpack.c.l.b16 %v174
    %v682 = vunpack.c.l.b16 %v175
    %v683 = vunpack.c.l.b16 %v176
    %v684 = vunpack.c.l.b16 %v177
    %v685 = vunpack.c.l.b16 %v178
    %v686 = vunpack.c.l.b16 %v179
    %v687 = vunpack.c.l.b16 %v180
    %v688 = vunpack.c.l.b16 %v181
    %v689 = vunpack.c.l.b16 %v182
    %v690 = vunpack.c.l.b16 %v183
    %v691 = vunpack.c.l.b16 %v184
    %v692 = vunpack.c.l.b16 %v185
    %v693 = vunpack.c.l.b16 %v186
    %v694 = vunpack.c.l.b16 %v187
    %v695 = vunpack.c.l.b16 %v188
    %v696 = vunpack.c.l.b16 %v189
    %v697 = vunpack.c.l.b16 %v190
    %v698 = vunpack.c.l.b16 %v191
    %v699 = vunpack.c.l.b16 %v192
    %v700 = vunpack.c.l.b16 %v193
    %v701 = vunpack.c.l.b16 %v194
    %v702 = vunpack.c.l.b16 %v195
    %v703 = vunpack.c.l.b16 %v196
    %v704 = vunpack.c.l.b16 %v197
    %v705 = vunpack.c.l.b16 %v198
    %v706 = vunpack.c.l.b16 %v199
    %v707 = vunpack.c.l.b16 %v200
    %v708 = vunpack.c.l.b16 %v201
    %v709 = vunpack.c.l.b16 %v202
    %v710 = vunpack.c.l.b16 %v203
    %v711 = vunpack.c.l.b16 %v204
    %v712 = vunpack.c.l.b16 %v205
    %v713 = vunpack.c.l.b16 %v206
    %v714 = vunpack.c.l.b16 %v207
    %v715 = vunpack.c.l.b16 %v208
    %v716 = vunpack.c.l.b16 %v209
    %v717 = vunpack.c.l.b16 %v210
    %v718 = vunpack.c.l.b16 %v211
    %v719 = vunpack.c.l.b16 %v212
    %v720 = vunpack.c.l.b16 %v213
    %v721 = vunpack.c.l.b16 %v214
    %v722 = vunpack.c.l.b16 %v215
    %v723 = vunpack.c.l.b16 %v216
    %v724 = vunpack.c.l.b16 %v217
    %v725 = vunpack.c.l.b16 %v218
    %v726 = vunpack.c.l.b16 %v219
    %v727 = vpack.c.b16 %v600, %v599
    %v728 = vpack.c.b16 %v602, %v601
    %v729 = vpack.c.b16 %v604, %v603
    %v730 = vpack.c.b16 %v606, %v605
    %v731 = vpack.c.b16 %v608, %v607
    %v732 = vpack.c.b16 %v610, %v609
    %v733 = vpack.c.b16 %v612, %v611
    %v734 = vpack.c.b16 %v614, %v613
    %v735 = vpack.c.b16 %v616, %v615
    %v736 = vpack.c.b16 %v618, %v617
    %v737 = vpack.c.b16 %v620, %v619
    %v738 = vpack.c.b16 %v622, %v621
    %v739 = vpack.c.b16 %v624, %v623
    %v740 = vpack.c.b16 %v626, %v625
    %v741 = vpack.c.b16 %v628, %v627
    %v742 = vpack.c.b16 %v630, %v629
    %v743 = vpack.c.b16 %v632, %v631
    %v744 = vpack.c.b16 %v634, %v633
    %v745 = vpack.c.b16 %v636, %v635
    %v746 = vpack.c.b16 %v638, %v637
    %v747 = vpack.c.b16 %v640, %v639
    %v748 = vpack.c.b16 %v642, %v641
    %v749 = vpack.c.b16 %v644, %v643
    %v750 = vpack.c.b16 %v646, %v645
    %v751 = vpack.c.b16 %v648, %v647
    %v752 = vpack.c.b16 %v650, %v649
    %v753 = vpack.c.b16 %v652, %v651
    %v754 = vpack.c.b16 %v654, %v653
    %v755 = vpack.c.b16 %v656, %v655
    %v756 = vpack.c.b16 %v658, %v657
    %v757 = vpack.c.b16 %v660, %v659
    %v758 = vpack.c.b16 %v662, %v661
    %v759 = vpack.c.b16 %v664, %v663
    %v760 = vpack.c.b16 %v666, %v665
    %v761 = vpack.c.b16 %v668, %v667
    %v762 = vpack.c.b16 %v670, %v669
    %v763 = vpack.c.b16 %v672, %v671
    %v764 = vpack.c.b16 %v674, %v673
    %v765 = vpack.c.b16 %v676, %v675
    %v766 = vpack.c.b16 %v678, %v677
    %v767 = vpack.c.b16 %v680, %v679
    %v768 = vpack.c.b16 %v682, %v681
    %v769 = vpack.c.b16 %v684, %v683
    %v770 = vpack.c.b16 %v686, %v685
    %v771 = vpack.c.b16 %v688, %v687
    %v772 = vpack.c.b16 %v690, %v689
    %v773 = vpack.c.b16 %v692, %v691
    %v774 = vpack.c.b16 %v694, %v693
    %v775 = vpack.c.b16 %v696, %v695
    %v776 = vpack.c.b16 %v698, %v697
    %v777 = vpack.c.b16 %v700, %v699
    %v778 = vpack.c.b16 %v702, %v701
    %v779 = vpack.c.b16 %v704, %v703
    %v780 = vpack.c.b16 %v706, %v705
    %v781 = vpack.c.b16 %v708, %v707
    %v782 = vpack.c.b16 %v710, %v709
    %v783 = vpack.c.b16 %v712, %v711
    %v784 = vpack.c.b16 %v714, %v713
    %v785 = vpack.c.b16 %v716, %v715
    %v786 = vpack.c.b16 %v718, %v717
    %v787 = vpack.c.b16 %v720, %v719
    %v788 = vpack.c.b16 %v722, %v721
    %v789 = vpack.c.b16 %v724, %v723
    %v790 = vpack.c.b16 %v726, %v725
    %855 = vmatprep.subr.bf16.mxu0 0
    %856 = vmatpush1.bf16.msra.mxu0 %v734
    %857 = vmatprep.subr.bf16.mxu0 0
    %858 = vmatpush1.bf16.msra.mxu0 %v733
    %859 = vmatprep.subr.bf16.mxu0 0
    %860 = vmatpush1.bf16.msra.mxu0 %v732
    %861 = vmatprep.subr.bf16.mxu0 0
    %862 = vmatpush1.bf16.msra.mxu0 %v731
    %863 = vmatprep.subr.bf16.mxu0 0
    %864 = vmatpush1.bf16.msra.mxu0 %v730
    %865 = vmatprep.subr.bf16.mxu0 0
    %866 = vmatpush1.bf16.msra.mxu0 %v729
    %867 = vmatprep.subr.bf16.mxu0 0
    %868 = vmatpush1.bf16.msra.mxu0 %v728
    %869 = vmatprep.subr.bf16.mxu0 0
    %870 = vmatpush1.bf16.msra.mxu0 %v727
    %871 = vmatprep.subr.bf16.mxu0 0
    %872 = vmatpush2.bf16.msra.mxu0 %v742
    %873 = vmatprep.subr.bf16.mxu0 0
    %874 = vmatpush2.bf16.msra.mxu0 %v741
    %875 = vmatprep.subr.bf16.mxu0 0
    %876 = vmatpush2.bf16.msra.mxu0 %v740
    %877 = vmatprep.subr.bf16.mxu0 0
    %878 = vmatpush2.bf16.msra.mxu0 %v739
    %879 = vmatprep.subr.bf16.mxu0 0
    %880 = vmatpush2.bf16.msra.mxu0 %v738
    %881 = vmatprep.subr.bf16.mxu0 0
    %882 = vmatpush2.bf16.msra.mxu0 %v737
    %883 = vmatprep.subr.bf16.mxu0 0
    %884 = vmatpush2.bf16.msra.mxu0 %v736
    %885 = vmatprep.subr.bf16.mxu0 0
    %886 = vmatpush2.bf16.msra.mxu0 %v735
    %887 = vmatprep.mubr.bf16.mxu0 %v451
    %888 = vmatmul.mubr.bf16.gmra.mxu0 %v437
    %v889 = vpop.f32.mrf.mxu0
    %v890 = vadd.f32 %v408, %v889
    %v891 = vpop.f32.mrf.mxu0
    %v892 = vpop.f32.mrf.mxu0
    %v893 = vpop.f32.mrf.mxu0
    %894 = vdwg.mxu0
    %895 = vmatprep.subr.bf16.mxu0 0
    %896 = vmatpush1.bf16.msra.mxu0 %v750
    %897 = vmatprep.subr.bf16.mxu0 0
    %898 = vmatpush1.bf16.msra.mxu0 %v749
    %899 = vmatprep.subr.bf16.mxu0 0
    %900 = vmatpush1.bf16.msra.mxu0 %v748
    %901 = vmatprep.subr.bf16.mxu0 0
    %902 = vmatpush1.bf16.msra.mxu0 %v747
    %903 = vmatprep.subr.bf16.mxu0 0
    %904 = vmatpush1.bf16.msra.mxu0 %v746
    %905 = vmatprep.subr.bf16.mxu0 0
    %906 = vmatpush1.bf16.msra.mxu0 %v745
    %907 = vmatprep.subr.bf16.mxu0 0
    %908 = vmatpush1.bf16.msra.mxu0 %v744
    %909 = vmatprep.subr.bf16.mxu0 0
    %910 = vmatpush1.bf16.msra.mxu0 %v743
    %911 = vmatprep.subr.bf16.mxu0 0
    %912 = vmatpush2.bf16.msra.mxu0 %v758
    %913 = vmatprep.subr.bf16.mxu0 0
    %914 = vmatpush2.bf16.msra.mxu0 %v757
    %915 = vmatprep.subr.bf16.mxu0 0
    %916 = vmatpush2.bf16.msra.mxu0 %v756
    %917 = vmatprep.subr.bf16.mxu0 0
    %918 = vmatpush2.bf16.msra.mxu0 %v755
    %919 = vmatprep.subr.bf16.mxu0 0
    %920 = vmatpush2.bf16.msra.mxu0 %v754
    %921 = vmatprep.subr.bf16.mxu0 0
    %922 = vmatpush2.bf16.msra.mxu0 %v753
    %923 = vmatprep.subr.bf16.mxu0 0
    %924 = vmatpush2.bf16.msra.mxu0 %v752
    %925 = vmatprep.subr.bf16.mxu0 0
    %926 = vmatpush2.bf16.msra.mxu0 %v751
    %927 = vmatprep.mubr.bf16.mxu0 %v461
    %928 = vmatmul.mubr.bf16.gmra.mxu0 %v459
    %v929 = vpop.f32.mrf.mxu0
    %v930 = vadd.f32 %v890, %v929
    %v931 = vpop.f32.mrf.mxu0
    %v932 = vpop.f32.mrf.mxu0
    %v933 = vpop.f32.mrf.mxu0
    %934 = vdwg.mxu0
    %935 = vmatprep.subr.bf16.mxu0 0
    %936 = vmatpush1.bf16.msra.mxu0 %v766
    %937 = vmatprep.subr.bf16.mxu0 0
    %938 = vmatpush1.bf16.msra.mxu0 %v765
    %939 = vmatprep.subr.bf16.mxu0 0
    %940 = vmatpush1.bf16.msra.mxu0 %v764
    %941 = vmatprep.subr.bf16.mxu0 0
    %942 = vmatpush1.bf16.msra.mxu0 %v763
    %943 = vmatprep.subr.bf16.mxu0 0
    %944 = vmatpush1.bf16.msra.mxu0 %v762
    %945 = vmatprep.subr.bf16.mxu0 0
    %946 = vmatpush1.bf16.msra.mxu0 %v761
    %947 = vmatprep.subr.bf16.mxu0 0
    %948 = vmatpush1.bf16.msra.mxu0 %v760
    %949 = vmatprep.subr.bf16.mxu0 0
    %950 = vmatpush1.bf16.msra.mxu0 %v759
    %951 = vmatprep.subr.bf16.mxu0 0
    %952 = vmatpush2.bf16.msra.mxu0 %v774
    %953 = vmatprep.subr.bf16.mxu0 0
    %954 = vmatpush2.bf16.msra.mxu0 %v773
    %955 = vmatprep.subr.bf16.mxu0 0
    %956 = vmatpush2.bf16.msra.mxu0 %v772
    %957 = vmatprep.subr.bf16.mxu0 0
    %958 = vmatpush2.bf16.msra.mxu0 %v771
    %959 = vmatprep.subr.bf16.mxu0 0
    %960 = vmatpush2.bf16.msra.mxu0 %v770
    %961 = vmatprep.subr.bf16.mxu0 0
    %962 = vmatpush2.bf16.msra.mxu0 %v769
    %963 = vmatprep.subr.bf16.mxu0 0
    %964 = vmatpush2.bf16.msra.mxu0 %v768
    %965 = vmatprep.subr.bf16.mxu0 0
    %966 = vmatpush2.bf16.msra.mxu0 %v767
    %967 = vmatprep.mubr.bf16.mxu0 %v458
    %968 = vmatmul.mubr.bf16.gmra.mxu0 %v444
    %v969 = vpop.f32.mrf.mxu0
    %v970 = vadd.f32 %v930, %v969
    %v971 = vpop.f32.mrf.mxu0
    %v972 = vpop.f32.mrf.mxu0
    %v973 = vpop.f32.mrf.mxu0
    %974 = vdwg.mxu0
    %975 = vmatprep.subr.bf16.mxu0 0
    %976 = vmatpush1.bf16.msra.mxu0 %v782
    %977 = vmatprep.subr.bf16.mxu0 0
    %978 = vmatpush1.bf16.msra.mxu0 %v781
    %979 = vmatprep.subr.bf16.mxu0 0
    %980 = vmatpush1.bf16.msra.mxu0 %v780
    %981 = vmatprep.subr.bf16.mxu0 0
    %982 = vmatpush1.bf16.msra.mxu0 %v779
    %983 = vmatprep.subr.bf16.mxu0 0
    %984 = vmatpush1.bf16.msra.mxu0 %v778
    %985 = vmatprep.subr.bf16.mxu0 0
    %986 = vmatpush1.bf16.msra.mxu0 %v777
    %987 = vmatprep.subr.bf16.mxu0 0
    %988 = vmatpush1.bf16.msra.mxu0 %v776
    %989 = vmatprep.subr.bf16.mxu0 0
    %990 = vmatpush1.bf16.msra.mxu0 %v775
    %991 = vmatprep.subr.bf16.mxu0 0
    %992 = vmatpush2.bf16.msra.mxu0 %v790
    %993 = vmatprep.subr.bf16.mxu0 0
    %994 = vmatpush2.bf16.msra.mxu0 %v789
    %995 = vmatprep.subr.bf16.mxu0 0
    %996 = vmatpush2.bf16.msra.mxu0 %v788
    %997 = vmatprep.subr.bf16.mxu0 0
    %998 = vmatpush2.bf16.msra.mxu0 %v787
    %999 = vmatprep.subr.bf16.mxu0 0
    %1000 = vmatpush2.bf16.msra.mxu0 %v786
    %1001 = vmatprep.subr.bf16.mxu0 0
    %1002 = vmatpush2.bf16.msra.mxu0 %v785
    %1003 = vmatprep.subr.bf16.mxu0 0
    %1004 = vmatpush2.bf16.msra.mxu0 %v784
    %1005 = vmatprep.subr.bf16.mxu0 0
    %1006 = vmatpush2.bf16.msra.mxu0 %v783
    %1007 = vmatprep.mubr.bf16.mxu0 %v462
    %1008 = vmatmul.mubr.bf16.gmra.mxu0 %v460
    %v1009 = vpop.f32.mrf.mxu0
    %v1010 = vadd.f32 %v970, %v1009
    %v1011 = vpop.f32.mrf.mxu0
    %v1012 = vpop.f32.mrf.mxu0
    %v1013 = vpop.f32.mrf.mxu0
    %1014 = vdwg.mxu0
    %v1015 = vld [vmem:[%s5] sm:$0x1]
    %v1017 = vlaneseq
    %v1018 = vshrl.u32 %v1017, 7
    %v1019 = vsub.s32 0, %v1018
    %v1020 = vrot.slane %v1015, %v1019
    %v1022 = vadd.f32 %v1010, %v1020
    %v1023 = vpack.c.bf16 %v1022, %v1022
    %1024 = vst [vmem:[#allocation11] sm:$0x1] %v1023
    // Predicated region
    $region46: #{tpu_custom_call.1} parent=1 // pred_check
      _
    $region47: #{tpu_custom_call.1} parent=1 // pred_check_branch
      %1026 = sbr.rel (0) target = $region49
    $region48: #{tpu_custom_call.1} parent=1 // pred_region
      %s1028 = ssub.s32 16, 16
      %1029 = vsyncadd [#allocation4], %s1028
      %s1031 = sshll.u32 [#allocation11], 4
      %s1032 = int_to_ptr.vmem [resolvable:$true] %s1031
      %1034 = dma.vmem_to_hbm [thread:$0]  %s1032, 16, %s6, [#allocation4]
    $region49: #{tpu_custom_call.1} parent=1 // pred_fallthru
      _
    // Predicated region
    $region50: #{tpu_custom_call.1} parent=1 // pred_check
      _
    $region51: #{tpu_custom_call.1} parent=1 // pred_check_branch
      %1036 = sbr.rel (0) target = $region53
    $region52: #{tpu_custom_call.1} parent=1 // pred_region
      %1037 = dma.done [#allocation4], 16
    $region53: #{tpu_custom_call.1} parent=1 // pred_fallthru
      _
    %1038 = vsyncpa [#allocation3], 1
    %1039 = vsyncpa [#allocation6], 1
    %1040 = vsyncpa [#allocation9], 1
    %1041 = vsyncpa [#allocation4], 1

</llo_original>
